<compile_context>
chip_gen: v7x
topology: tpu7x:2x2x1
jax: 0.10.0
libtpu: 0.0.40
codegen_flags: <defaults>
</compile_context>

<pallas_src>
import functools

import jax
import jax.numpy as jnp
from jax.experimental import pallas as pl
from jax.experimental.pallas import tpu as pltpu


# ----------------------------------------------------------------------------
# Pallas kernel: one fused TemporalBlock (one batch element per grid step)
# ----------------------------------------------------------------------------
def _temporal_block_kernel(x_ref, w1_ref, b1_ref, w2_ref, b2_ref, *rest,
                           k, dilation, has_downsample, matmul_dtype):
    """Fused causal-dilated TemporalBlock for one batch element.

    x_ref : (P + Tp, Cin_p)  f32, first P rows are zeros (causal padding),
            channels padded to a multiple of 128, time padded to a multiple of 8.
    w1_ref: (k, Cin_p, Cout_p)   bf16 (tap-major), w2_ref: (k, Cout_p, Cout_p).
    b1_ref / b2_ref: (1, Cout_p) f32.
    Optional downsample (Cin != Cout): wd_ref (Cin_p, Cout_p), bd_ref (1, Cout_p).
    o_ref : (Tp, Cout_p) f32.
    h1_ref: (P + Tp, Cout_p) f32 VMEM scratch (causally padded conv1 activation).
    """
    if has_downsample:
        wd_ref, bd_ref, o_ref, h1_ref = rest
    else:
        o_ref, h1_ref = rest

    P = dilation * (k - 1)
    Tp = x_ref.shape[0] - P
    Cout_p = o_ref.shape[-1]
    cdt = matmul_dtype

    def causal_conv(src_ref, w_ref, b_ref):
        # src_ref rows [0, P) are zeros; output row t of tap j reads
        # src_ref[P + t - dilation*(k-1-j)] — a static slice, no copies of zeros.
        acc = None
        for j in range(k):
            off = dilation * (k - 1 - j)
            a = src_ref[pl.ds(P - off, Tp), :].astype(cdt)
            p = jnp.dot(a, w_ref[j].astype(cdt),
                        preferred_element_type=jnp.float32)
            acc = p if acc is None else acc + p
        return acc + b_ref[...]

    # conv1 + chomp1 + relu1.  TODO(synk): dropout1 (p=0.2) is identity in eval mode.
    h1 = jnp.maximum(causal_conv(x_ref, w1_ref, b1_ref), 0.0)      # (Tp, Cout_p) f32
    if P > 0:
        h1_ref[pl.ds(0, P), :] = jnp.zeros((P, Cout_p), h1_ref.dtype)
    h1_ref[pl.ds(P, Tp), :] = h1

    # conv2 + chomp2 + relu2.  TODO(synk): dropout2 (p=0.2) is identity in eval mode.
    h2 = jnp.maximum(causal_conv(h1_ref, w2_ref, b2_ref), 0.0)     # (Tp, Cout_p) f32

    # residual: identity if n_inputs == n_outputs, else 1x1 downsample conv.
    x_valid = x_ref[pl.ds(P, Tp), :]
    if has_downsample:
        res = (jnp.dot(x_valid.astype(cdt), wd_ref[...].astype(cdt),
                       preferred_element_type=jnp.float32) + bd_ref[...])
    else:
        res = x_valid                                              # f32, Cin_p == Cout_p

    o_ref[...] = jnp.maximum(h2 + res, 0.0)


# ----------------------------------------------------------------------------
# Wrapper (PyTorch NCW layout in/out) + weight packing
# ----------------------------------------------------------------------------
def _round_up(v, m):
    return (v + m - 1) // m * m


def _pack_conv_weight(w, cin_p, cout_p, matmul_dtype):
    """(Cout, Cin, k) PyTorch conv weight -> (k, cin_p, cout_p), tap-major."""
    cout, cin, k = w.shape
    wt = jnp.transpose(w, (2, 1, 0))                               # (k, Cin, Cout)
    wt = jnp.pad(wt, ((0, 0), (0, cin_p - cin), (0, cout_p - cout)))
    return wt.astype(matmul_dtype)


def _pack_bias(b, cout_p):
    return jnp.pad(b, (0, cout_p - b.shape[0]))[None, :].astype(jnp.float32)


def temporal_block_forward(x_ncw, params, *, kernel_size, dilation,
                           matmul_dtype=jnp.bfloat16):
    """x_ncw: (N, Cin, T) f32 -> (N, Cout, T) f32 (same semantics as TemporalBlock)."""
    N, Cin, T = x_ncw.shape
    Cout = params["w1"].shape[0]
    k = kernel_size
    P = dilation * (k - 1)
    cin_p = _round_up(Cin, 128)
    cout_p = _round_up(Cout, 128)
    T_p = _round_up(T, 8)
    Tin = P + T_p
    has_ds = "wd" in params                                        # downsample iff Cin != Cout

    # channels-last; causal front-pad (P zero time steps), back-pad T to sublane
    # multiple, zero-pad channels to lane multiple (exact same math).
    x = jnp.transpose(x_ncw, (0, 2, 1)).astype(jnp.float32)        # (N, T, Cin)
    x = jnp.pad(x, ((0, 0), (P, T_p - T), (0, cin_p - Cin)))       # (N, Tin, cin_p)

    w1 = _pack_conv_weight(params["w1"], cin_p, cout_p, matmul_dtype)
    w2 = _pack_conv_weight(params["w2"], cout_p, cout_p, matmul_dtype)
    b1 = _pack_bias(params["b1"], cout_p)
    b2 = _pack_bias(params["b2"], cout_p)

    args = [x, w1, b1, w2, b2]
    in_specs = [
        pl.BlockSpec((None, Tin, cin_p), lambda n: (n, 0, 0)),
        pl.BlockSpec((k, cin_p, cout_p), lambda n: (0, 0, 0)),
        pl.BlockSpec((1, cout_p), lambda n: (0, 0)),
        pl.BlockSpec((k, cout_p, cout_p), lambda n: (0, 0, 0)),
        pl.BlockSpec((1, cout_p), lambda n: (0, 0)),
    ]
    if has_ds:
        wd = jnp.pad(jnp.transpose(params["wd"][:, :, 0], (1, 0)),
                     ((0, cin_p - Cin), (0, cout_p - Cout))).astype(matmul_dtype)
        bd = _pack_bias(params["bd"], cout_p)
        args += [wd, bd]
        in_specs += [pl.BlockSpec((cin_p, cout_p), lambda n: (0, 0)),
                     pl.BlockSpec((1, cout_p), lambda n: (0, 0))]

    out = pl.pallas_call(
        functools.partial(_temporal_block_kernel,
                          k=k, dilation=dilation,
                          has_downsample=has_ds, matmul_dtype=matmul_dtype),
        out_shape=jax.ShapeDtypeStruct((N, T_p, cout_p), jnp.float32),
        grid_spec=pltpu.PrefetchScalarGridSpec(
            num_scalar_prefetch=0,
            grid=(N,),
            in_specs=in_specs,
            out_specs=pl.BlockSpec((None, T_p, cout_p), lambda n: (n, 0, 0)),
            scratch_shapes=[pltpu.VMEM((Tin, cout_p), jnp.float32)],
        ),
        compiler_params=pltpu.CompilerParams(dimension_semantics=("parallel",)),
    )(*args)

    out = out[:, :T, :Cout]                                        # drop padding
    return jnp.transpose(out, (0, 2, 1))                           # back to (N, Cout, T)


# ----------------------------------------------------------------------------
# Synthetic parameters (deterministic) and a pure-JAX reference for checking
# ----------------------------------------------------------------------------
def init_temporal_block_params(key, n_inputs, n_outputs, kernel_size):
    # TODO(synk): weight_norm is folded into an effective conv weight; per
    # init_weights(), effective weights are N(0, 0.01); biases use the default
    # Conv1d uniform(-1/sqrt(fan_in), 1/sqrt(fan_in)) init.
    ks = jax.random.split(key, 6)
    k1 = 1.0 / (n_inputs * kernel_size) ** 0.5
    k2 = 1.0 / (n_outputs * kernel_size) ** 0.5
    p = {
        "w1": 0.01 * jax.random.normal(ks[0], (n_outputs, n_inputs, kernel_size), jnp.float32),
        "b1": jax.random.uniform(ks[1], (n_outputs,), jnp.float32, -k1, k1),
        "w2": 0.01 * jax.random.normal(ks[2], (n_outputs, n_outputs, kernel_size), jnp.float32),
        "b2": jax.random.uniform(ks[3], (n_outputs,), jnp.float32, -k2, k2),
    }
    if n_inputs != n_outputs:
        kd = 1.0 / n_inputs ** 0.5
        p["wd"] = 0.01 * jax.random.normal(ks[4], (n_outputs, n_inputs, 1), jnp.float32)
        p["bd"] = jax.random.uniform(ks[5], (n_outputs,), jnp.float32, -kd, kd)
    return p


def _ref_causal_conv(x_ncw, w, b, dilation):
    """Conv1d(stride=1, padding=(k-1)*d, dilation=d) followed by Chomp1d."""
    k = w.shape[-1]
    T = x_ncw.shape[-1]
    pad = dilation * (k - 1)
    xp = jnp.pad(x_ncw, ((0, 0), (0, 0), (pad, 0)))
    out = jnp.zeros((x_ncw.shape[0], w.shape[0], T), jnp.float32)
    for j in range(k):
        out = out + jnp.einsum("oc,nct->not", w[:, :, j],
                               xp[:, :, j * dilation:j * dilation + T])
    return out + b[None, :, None]


def _ref_temporal_block(x_ncw, p, dilation):
    h = jax.nn.relu(_ref_causal_conv(x_ncw, p["w1"], p["b1"], dilation))
    h = jax.nn.relu(_ref_causal_conv(h, p["w2"], p["b2"], dilation))
    if "wd" in p:
        res = jnp.einsum("oc,nct->not", p["wd"][:, :, 0], x_ncw) + p["bd"][None, :, None]
    else:
        res = x_ncw
    return jax.nn.relu(h + res)


# ----------------------------------------------------------------------------
# Main
# ----------------------------------------------------------------------------
if __name__ == "__main__":
    key = jax.random.PRNGKey(0)
    k_p1, k_p2, k_x1, k_x2 = jax.random.split(key, 4)

    N, T = 2, 16
    KERNEL_SIZE = 2

    # Case 1: n_inputs == n_outputs (downsample is None), dilation 2.
    C1, D1 = 32, 2
    params1 = init_temporal_block_params(k_p1, C1, C1, KERNEL_SIZE)
    x1 = jax.random.normal(k_x1, (N, C1, T), jnp.float32)
    fwd1 = jax.jit(functools.partial(temporal_block_forward,
                                     kernel_size=KERNEL_SIZE, dilation=D1,
                                     matmul_dtype=jnp.bfloat16))
    y1 = fwd1(x1, params1)
    jax.block_until_ready(y1)
    assert y1.shape == (N, C1, T)
    ref1 = _ref_temporal_block(x1, params1, D1)
    assert jnp.allclose(y1, ref1, atol=3e-2, rtol=3e-2), float(jnp.max(jnp.abs(y1 - ref1)))

    # Case 2: n_inputs != n_outputs (1x1 downsample active), dilation 1.
    Cin2, Cout2, D2 = 16, 32, 1
    params2 = init_temporal_block_params(k_p2, Cin2, Cout2, KERNEL_SIZE)
    x2 = jax.random.normal(k_x2, (N, Cin2, T), jnp.float32)
    fwd2 = jax.jit(functools.partial(temporal_block_forward,
                                     kernel_size=KERNEL_SIZE, dilation=D2,
                                     matmul_dtype=jnp.bfloat16))
    y2 = fwd2(x2, params2)
    jax.block_until_ready(y2)
    assert y2.shape == (N, Cout2, T)
    ref2 = _ref_temporal_block(x2, params2, D2)
    assert jnp.allclose(y2, ref2, atol=3e-2, rtol=3e-2), float(jnp.max(jnp.abs(y2 - ref2)))

    print("KERNEL_OK")
</pallas_src>

<mosaic_0001>
module attributes {stable_mosaic.version = 11 : i64} {
  func.func @_temporal_block_kernel(%arg0: i32, %arg1: memref<1x18x128xf32, #tpu.memory_space<vmem>>, %arg2: memref<2x128x128xbf16, #tpu.memory_space<vmem>>, %arg3: memref<1x128xf32, #tpu.memory_space<vmem>>, %arg4: memref<2x128x128xbf16, #tpu.memory_space<vmem>>, %arg5: memref<1x128xf32, #tpu.memory_space<vmem>>, %arg6: memref<1x16x128xf32, #tpu.memory_space<vmem>>, %arg7: memref<18x128xf32, #tpu.memory_space<vmem>>) attributes {dimension_semantics = [#tpu.dimension_semantics<parallel>], iteration_bounds = array<i64: 2>, scalar_prefetch = 0 : i64, scratch_operands = 1 : i64, tpu.core_type = #tpu.core_type<tc>, window_params = [{transform_indices = @transform_0, window_bounds = array<i64: 1, 18, 128>}, {pipeline_mode = #tpu.pipeline_mode<synchronous>, transform_indices = @transform_1, window_bounds = array<i64: 2, 128, 128>}, {pipeline_mode = #tpu.pipeline_mode<synchronous>, transform_indices = @transform_2, window_bounds = array<i64: 1, 128>}, {pipeline_mode = #tpu.pipeline_mode<synchronous>, transform_indices = @transform_3, window_bounds = array<i64: 2, 128, 128>}, {pipeline_mode = #tpu.pipeline_mode<synchronous>, transform_indices = @transform_4, window_bounds = array<i64: 1, 128>}, {transform_indices = @transform_5, window_bounds = array<i64: 1, 16, 128>}]} {
    %c0 = arith.constant 0 : index
    %c0_0 = arith.constant 0 : index
    %c0_1 = arith.constant 0 : index
    %0 = vector.load %arg1[%c0, %c0_0, %c0_1] : memref<1x18x128xf32, #tpu.memory_space<vmem>>, vector<1x16x128xf32>
    %1 = vector.shape_cast %0 : vector<1x16x128xf32> to vector<16x128xf32>
    %2 = arith.truncf %1 : vector<16x128xf32> to vector<16x128xbf16>
    %c0_2 = arith.constant 0 : index
    %c0_3 = arith.constant 0 : index
    %c0_4 = arith.constant 0 : index
    %3 = vector.load %arg2[%c0_2, %c0_3, %c0_4] : memref<2x128x128xbf16, #tpu.memory_space<vmem>>, vector<1x128x128xbf16>
    %4 = vector.shape_cast %3 : vector<1x128x128xbf16> to vector<128x128xbf16>
    %cst = arith.constant dense<0.000000e+00> : vector<16x128xf32>
    %5 = tpu.matmul %2, %4, %cst {dimension_numbers = #tpu.dot_dimension_numbers<[1], [0], [0], [1], [0, 0, 1, 1], [], []>} : vector<16x128xbf16>, vector<128x128xbf16>, vector<16x128xf32> -> vector<16x128xf32>
    %c0_5 = arith.constant 0 : index
    %c2 = arith.constant 2 : index
    %c0_6 = arith.constant 0 : index
    %6 = vector.load %arg1[%c0_5, %c2, %c0_6] : memref<1x18x128xf32, #tpu.memory_space<vmem>>, vector<1x16x128xf32>
    %7 = vector.shape_cast %6 : vector<1x16x128xf32> to vector<16x128xf32>
    %8 = arith.truncf %7 : vector<16x128xf32> to vector<16x128xbf16>
    %c1 = arith.constant 1 : index
    %c0_7 = arith.constant 0 : index
    %c0_8 = arith.constant 0 : index
    %9 = vector.load %arg2[%c1, %c0_7, %c0_8] : memref<2x128x128xbf16, #tpu.memory_space<vmem>>, vector<1x128x128xbf16>
    %10 = vector.shape_cast %9 : vector<1x128x128xbf16> to vector<128x128xbf16>
    %cst_9 = arith.constant dense<0.000000e+00> : vector<16x128xf32>
    %11 = tpu.matmul %8, %10, %cst_9 {dimension_numbers = #tpu.dot_dimension_numbers<[1], [0], [0], [1], [0, 0, 1, 1], [], []>} : vector<16x128xbf16>, vector<128x128xbf16>, vector<16x128xf32> -> vector<16x128xf32>
    %12 = arith.addf %5, %11 : vector<16x128xf32>
    %c0_10 = arith.constant 0 : index
    %c0_11 = arith.constant 0 : index
    %13 = vector.load %arg3[%c0_10, %c0_11] : memref<1x128xf32, #tpu.memory_space<vmem>>, vector<1x128xf32>
    %14 = vector.broadcast %13 : vector<1x128xf32> to vector<16x128xf32>
    %15 = arith.addf %12, %14 : vector<16x128xf32>
    %cst_12 = arith.constant 0.000000e+00 : f32
    %16 = vector.broadcast %cst_12 : f32 to vector<16x128xf32>
    %17 = arith.maximumf %15, %16 : vector<16x128xf32>
    %cst_13 = arith.constant 0.000000e+00 : f32
    %18 = vector.broadcast %cst_13 : f32 to vector<2x128xf32>
    %c0_14 = arith.constant 0 : index
    %c0_15 = arith.constant 0 : index
    %19 = vector.load %arg7[%c0_14, %c0_15] : memref<18x128xf32, #tpu.memory_space<vmem>>, vector<2x128xf32>
    tpu.vector_store %arg7[%c0_14, %c0_15], %18 {strides = array<i32>} : memref<18x128xf32, #tpu.memory_space<vmem>>, vector<2x128xf32>,
    %c2_16 = arith.constant 2 : index
    %c0_17 = arith.constant 0 : index
    %20 = vector.load %arg7[%c2_16, %c0_17] : memref<18x128xf32, #tpu.memory_space<vmem>>, vector<16x128xf32>
    tpu.vector_store %arg7[%c2_16, %c0_17], %17 {strides = array<i32>} : memref<18x128xf32, #tpu.memory_space<vmem>>, vector<16x128xf32>,
    %c0_18 = arith.constant 0 : index
    %c0_19 = arith.constant 0 : index
    %21 = vector.load %arg7[%c0_18, %c0_19] : memref<18x128xf32, #tpu.memory_space<vmem>>, vector<16x128xf32>
    %22 = arith.truncf %21 : vector<16x128xf32> to vector<16x128xbf16>
    %c0_20 = arith.constant 0 : index
    %c0_21 = arith.constant 0 : index
    %c0_22 = arith.constant 0 : index
    %23 = vector.load %arg4[%c0_20, %c0_21, %c0_22] : memref<2x128x128xbf16, #tpu.memory_space<vmem>>, vector<1x128x128xbf16>
    %24 = vector.shape_cast %23 : vector<1x128x128xbf16> to vector<128x128xbf16>
    %cst_23 = arith.constant dense<0.000000e+00> : vector<16x128xf32>
    %25 = tpu.matmul %22, %24, %cst_23 {dimension_numbers = #tpu.dot_dimension_numbers<[1], [0], [0], [1], [0, 0, 1, 1], [], []>} : vector<16x128xbf16>, vector<128x128xbf16>, vector<16x128xf32> -> vector<16x128xf32>
    %c2_24 = arith.constant 2 : index
    %c0_25 = arith.constant 0 : index
    %26 = vector.load %arg7[%c2_24, %c0_25] : memref<18x128xf32, #tpu.memory_space<vmem>>, vector<16x128xf32>
    %27 = arith.truncf %26 : vector<16x128xf32> to vector<16x128xbf16>
    %c1_26 = arith.constant 1 : index
    %c0_27 = arith.constant 0 : index
    %c0_28 = arith.constant 0 : index
    %28 = vector.load %arg4[%c1_26, %c0_27, %c0_28] : memref<2x128x128xbf16, #tpu.memory_space<vmem>>, vector<1x128x128xbf16>
    %29 = vector.shape_cast %28 : vector<1x128x128xbf16> to vector<128x128xbf16>
    %cst_29 = arith.constant dense<0.000000e+00> : vector<16x128xf32>
    %30 = tpu.matmul %27, %29, %cst_29 {dimension_numbers = #tpu.dot_dimension_numbers<[1], [0], [0], [1], [0, 0, 1, 1], [], []>} : vector<16x128xbf16>, vector<128x128xbf16>, vector<16x128xf32> -> vector<16x128xf32>
    %31 = arith.addf %25, %30 : vector<16x128xf32>
    %c0_30 = arith.constant 0 : index
    %c0_31 = arith.constant 0 : index
    %32 = vector.load %arg5[%c0_30, %c0_31] : memref<1x128xf32, #tpu.memory_space<vmem>>, vector<1x128xf32>
    %33 = vector.broadcast %32 : vector<1x128xf32> to vector<16x128xf32>
    %34 = arith.addf %31, %33 : vector<16x128xf32>
    %cst_32 = arith.constant 0.000000e+00 : f32
    %35 = vector.broadcast %cst_32 : f32 to vector<16x128xf32>
    %36 = arith.maximumf %34, %35 : vector<16x128xf32>
    %c0_33 = arith.constant 0 : index
    %c2_34 = arith.constant 2 : index
    %c0_35 = arith.constant 0 : index
    %37 = vector.load %arg1[%c0_33, %c2_34, %c0_35] : memref<1x18x128xf32, #tpu.memory_space<vmem>>, vector<1x16x128xf32>
    %38 = vector.shape_cast %37 : vector<1x16x128xf32> to vector<16x128xf32>
    %39 = arith.addf %36, %38 : vector<16x128xf32>
    %cst_36 = arith.constant 0.000000e+00 : f32
    %40 = vector.broadcast %cst_36 : f32 to vector<16x128xf32>
    %41 = arith.maximumf %39, %40 : vector<16x128xf32>
    %c0_37 = arith.constant 0 : index
    %c0_38 = arith.constant 0 : index
    %c0_39 = arith.constant 0 : index
    %42 = vector.load %arg6[%c0_37, %c0_38, %c0_39] : memref<1x16x128xf32, #tpu.memory_space<vmem>>, vector<1x16x128xf32>
    %43 = vector.shape_cast %42 : vector<1x16x128xf32> to vector<16x128xf32>
    %44 = vector.shape_cast %41 : vector<16x128xf32> to vector<1x16x128xf32>
    tpu.vector_store %arg6[%c0_37, %c0_38, %c0_39], %44 {strides = array<i32>} : memref<1x16x128xf32, #tpu.memory_space<vmem>>, vector<1x16x128xf32>,
    return
  }
  func.func @transform_0(%arg0: i32) -> (i32, i32, i32) {
    %c0_i32 = arith.constant 0 : i32
    %c0_i32_0 = arith.constant 0 : i32
    %c0_i32_1 = arith.constant 0 : i32
    return %arg0, %c0_i32, %c0_i32_0 : i32, i32, i32
  }
  func.func @transform_1(%arg0: i32) -> (i32, i32, i32) {
    %c0_i32 = arith.constant 0 : i32
    %c0_i32_0 = arith.constant 0 : i32
    %c0_i32_1 = arith.constant 0 : i32
    %c0_i32_2 = arith.constant 0 : i32
    return %c0_i32, %c0_i32_0, %c0_i32_1 : i32, i32, i32
  }
  func.func @transform_2(%arg0: i32) -> (i32, i32) {
    %c0_i32 = arith.constant 0 : i32
    %c0_i32_0 = arith.constant 0 : i32
    %c0_i32_1 = arith.constant 0 : i32
    return %c0_i32, %c0_i32_0 : i32, i32
  }
  func.func @transform_3(%arg0: i32) -> (i32, i32, i32) {
    %c0_i32 = arith.constant 0 : i32
    %c0_i32_0 = arith.constant 0 : i32
    %c0_i32_1 = arith.constant 0 : i32
    %c0_i32_2 = arith.constant 0 : i32
    return %c0_i32, %c0_i32_0, %c0_i32_1 : i32, i32, i32
  }
  func.func @transform_4(%arg0: i32) -> (i32, i32) {
    %c0_i32 = arith.constant 0 : i32
    %c0_i32_0 = arith.constant 0 : i32
    %c0_i32_1 = arith.constant 0 : i32
    return %c0_i32, %c0_i32_0 : i32, i32
  }
  func.func @transform_5(%arg0: i32) -> (i32, i32, i32) {
    %c0_i32 = arith.constant 0 : i32
    %c0_i32_0 = arith.constant 0 : i32
    %c0_i32_1 = arith.constant 0 : i32
    return %arg0, %c0_i32, %c0_i32_0 : i32, i32, i32
  }
}

</mosaic_0001>

<llo_original>
// kernel: temporal_block_forward.1
$region0: #{temporal_block_forward.1}
  #allocation0 [shape = 'u32[]', space=smem, size = 0x4, offset = 0x4, fixed_abs, tag = 'smem constant byte address 0x4 - core index']
  #allocation1 [shape = 'u32[144,128]{1,0:T(1,128)}', space=vmem, size = 0x12000, scoped, tag = 'internal scratch']
  #allocation2 [shape = 'f32[18,128]{1,0:T(8,128)}', space=vmem, size = 0x3000, scoped, tag = 'scratch operand']
  %s0 = inlined_call_operand.vmem [shape: f32[2,18,128], index: 0, kind: input, shape index: {}]
  %s1 = inlined_call_operand.vmem [shape: bf16[2,128,128], index: 1, kind: input, shape index: {}]
  %s2 = inlined_call_operand.vmem [shape: f32[1,128], index: 2, kind: input, shape index: {}]
  %s3 = inlined_call_operand.vmem [shape: bf16[2,128,128], index: 3, kind: input, shape index: {}]
  %s4 = inlined_call_operand.vmem [shape: f32[1,128], index: 4, kind: input, shape index: {}]
  %s5 = inlined_call_operand.vmem [shape: f32[2,16,128], index: 5, kind: output, shape index: {}]
  %s6 = sld [smem:[#allocation0]]
  $region53: #{temporal_block_forward.1} parent=0
    _
  %s8 = ssub.s32 1, %s6
  %s9 = scalar_select 0, %s8, %s6
  loop: start=0, step=1, limit=4
  $region2: #{temporal_block_forward.1} parent=0 // loop_pre_header
    _
  $region3: #{temporal_block_forward.1} parent=0 // loop_header
    %s11 = sphi 0, %s15
    %p12 = scmp.ge.s32.totalorder %s11, 4
    %s21 = sphi 0, %s23
    %s24 = sphi 0, %s21
    %s25 = sphi 0, %s24
    %s41 = sphi 0, %s25
    %s45 = sphi 0, %s45
    %s47 = sphi 0, %s45
    %s48 = sphi 0, %s47
    %s62 = sphi 0, %s48
    %s66 = sphi 0, %s66
    %s68 = sphi 0, %s66
    %s69 = sphi 0, %s68
    %s83 = sphi 0, %s69
    %s87 = sphi 0, %s87
    %s89 = sphi 0, %s87
    %s90 = sphi 0, %s89
    %s104 = sphi 0, %s90
    %s108 = sphi 0, %s108
    %s110 = sphi 0, %s108
    %s111 = sphi 0, %s110
    %s125 = sphi 0, %s111
    %s131 = sphi 0, %s133
    %s134 = sphi 0, %s131
    %s135 = sphi 0, %s134
    %s151 = sphi 0, %s135
  $region4: #{temporal_block_forward.1} parent=0 // loop_header_branch
    %14 = sbr.rel (%p12) target = $region8
  $region5: #{temporal_block_forward.1} parent=0 // loop_body
    %s16 = ssub.s32 %s11, 1
    %s17 = ssub.s32 %s11, 2
    %s18 = sadd.s32 %s11, 1
    %s19 = ssub.s32 %s11, %s18
    %p20 = scmp.eq.s32.totalorder %s19, 0
    %s22 = sadd.s32 %s21, 1
    %s23 = scalar_select %p20, %s21, %s22
    %p26 = pneg %p20
    %p27 = scmp.eq.s32.totalorder %s11, 1
    %p28 = por %p26, %p27
    %p29 = scmp.ne.s32.totalorder %s21, %s24
    %p30 = scmp.eq.s32.totalorder %s11, 0
    %p31 = por %p29, %p30
    %p32 = scmp.ne.s32.totalorder %s21, %s24
    %p33 = scmp.eq.s32.totalorder %s16, 1
    %p34 = por %p32, %p33
    %p35 = scmp.ne.s32.totalorder %s24, %s25
    %p36 = scmp.eq.s32.totalorder %s16, 0
    %p37 = por %p35, %p36
    %p38 = scmp.ne.s32.totalorder %s24, %s25
    %p39 = scmp.eq.s32.totalorder %s17, 1
    %p40 = por %p38, %p39
    %p42 = scmp.ne.s32.totalorder %s25, %s41
    %p43 = scmp.eq.s32.totalorder %s17, 0
    %p44 = por %p42, %p43
    %s46 = sadd.s32 %s45, 1
    %p49 = scmp.eq.s32.totalorder %s11, 1
    %p50 = scmp.ne.s32.totalorder %s45, %s47
    %p51 = scmp.eq.s32.totalorder %s11, 0
    %p52 = por %p50, %p51
    %p53 = scmp.ne.s32.totalorder %s45, %s47
    %p54 = scmp.eq.s32.totalorder %s16, 1
    %p55 = por %p53, %p54
    %p56 = scmp.ne.s32.totalorder %s47, %s48
    %p57 = scmp.eq.s32.totalorder %s16, 0
    %p58 = por %p56, %p57
    %p59 = scmp.ne.s32.totalorder %s47, %s48
    %p60 = scmp.eq.s32.totalorder %s17, 1
    %p61 = por %p59, %p60
    %p63 = scmp.ne.s32.totalorder %s48, %s62
    %p64 = scmp.eq.s32.totalorder %s17, 0
    %p65 = por %p63, %p64
    %s67 = sadd.s32 %s66, 1
    %p70 = scmp.eq.s32.totalorder %s11, 1
    %p71 = scmp.ne.s32.totalorder %s66, %s68
    %p72 = scmp.eq.s32.totalorder %s11, 0
    %p73 = por %p71, %p72
    %p74 = scmp.ne.s32.totalorder %s66, %s68
    %p75 = scmp.eq.s32.totalorder %s16, 1
    %p76 = por %p74, %p75
    %p77 = scmp.ne.s32.totalorder %s68, %s69
    %p78 = scmp.eq.s32.totalorder %s16, 0
    %p79 = por %p77, %p78
    %p80 = scmp.ne.s32.totalorder %s68, %s69
    %p81 = scmp.eq.s32.totalorder %s17, 1
    %p82 = por %p80, %p81
    %p84 = scmp.ne.s32.totalorder %s69, %s83
    %p85 = scmp.eq.s32.totalorder %s17, 0
    %p86 = por %p84, %p85
    %s88 = sadd.s32 %s87, 1
    %p91 = scmp.eq.s32.totalorder %s11, 1
    %p92 = scmp.ne.s32.totalorder %s87, %s89
    %p93 = scmp.eq.s32.totalorder %s11, 0
    %p94 = por %p92, %p93
    %p95 = scmp.ne.s32.totalorder %s87, %s89
    %p96 = scmp.eq.s32.totalorder %s16, 1
    %p97 = por %p95, %p96
    %p98 = scmp.ne.s32.totalorder %s89, %s90
    %p99 = scmp.eq.s32.totalorder %s16, 0
    %p100 = por %p98, %p99
    %p101 = scmp.ne.s32.totalorder %s89, %s90
    %p102 = scmp.eq.s32.totalorder %s17, 1
    %p103 = por %p101, %p102
    %p105 = scmp.ne.s32.totalorder %s90, %s104
    %p106 = scmp.eq.s32.totalorder %s17, 0
    %p107 = por %p105, %p106
    %s109 = sadd.s32 %s108, 1
    %p112 = scmp.eq.s32.totalorder %s11, 1
    %p113 = scmp.ne.s32.totalorder %s108, %s110
    %p114 = scmp.eq.s32.totalorder %s11, 0
    %p115 = por %p113, %p114
    %p116 = scmp.ne.s32.totalorder %s108, %s110
    %p117 = scmp.eq.s32.totalorder %s16, 1
    %p118 = por %p116, %p117
    %p119 = scmp.ne.s32.totalorder %s110, %s111
    %p120 = scmp.eq.s32.totalorder %s16, 0
    %p121 = por %p119, %p120
    %p122 = scmp.ne.s32.totalorder %s110, %s111
    %p123 = scmp.eq.s32.totalorder %s17, 1
    %p124 = por %p122, %p123
    %p126 = scmp.ne.s32.totalorder %s111, %s125
    %p127 = scmp.eq.s32.totalorder %s17, 0
    %p128 = por %p126, %p127
    %s129 = ssub.s32 %s11, %s18
    %p130 = scmp.eq.s32.totalorder %s129, 0
    %s132 = sadd.s32 %s131, 1
    %s133 = scalar_select %p130, %s131, %s132
    %p136 = pneg %p130
    %p137 = scmp.eq.s32.totalorder %s11, 1
    %p138 = por %p136, %p137
    %p139 = scmp.ne.s32.totalorder %s131, %s134
    %p140 = scmp.eq.s32.totalorder %s11, 0
    %p141 = por %p139, %p140
    %p142 = scmp.ne.s32.totalorder %s131, %s134
    %p143 = scmp.eq.s32.totalorder %s16, 1
    %p144 = por %p142, %p143
    %p145 = scmp.ne.s32.totalorder %s134, %s135
    %p146 = scmp.eq.s32.totalorder %s16, 0
    %p147 = por %p145, %p146
    %p148 = scmp.ne.s32.totalorder %s134, %s135
    %p149 = scmp.eq.s32.totalorder %s17, 1
    %p150 = por %p148, %p149
    %p152 = scmp.ne.s32.totalorder %s135, %s151
    %p153 = scmp.eq.s32.totalorder %s17, 0
    %p154 = por %p152, %p153
    %p155 = scmp.le.s32.totalorder 1, %s11
    %p156 = scmp.lt.s32.totalorder %s11, 3
    %p157 = pnand %p155, %p156
    %p158 = pneg %p157
    // Predicated region
    $region9: #{temporal_block_forward.1} parent=5 // pred_check
      _
    $region10: #{temporal_block_forward.1} parent=5 // pred_check_branch
      %160 = sbr.rel (%p157) target = $region12
    $region11: #{temporal_block_forward.1} parent=5 // pred_region
      %s161 = ssub.s32 %s11, 1
      // Predicated region
      $region13: #{temporal_block_forward.1} parent=11 // pred_check
        %p162 = pneg %p58
      $region14: #{temporal_block_forward.1} parent=11 // pred_check_branch
        %164 = sbr.rel (%p162) target = $region16
      $region15: #{temporal_block_forward.1} parent=11 // pred_region
        _
      $region16: #{temporal_block_forward.1} parent=11 // pred_fallthru
        _
      // Predicated region
      $region17: #{temporal_block_forward.1} parent=11 // pred_check
        %p165 = pneg %p79
      $region18: #{temporal_block_forward.1} parent=11 // pred_check_branch
        %167 = sbr.rel (%p165) target = $region20
      $region19: #{temporal_block_forward.1} parent=11 // pred_region
        _
      $region20: #{temporal_block_forward.1} parent=11 // pred_fallthru
        _
      // Predicated region
      $region21: #{temporal_block_forward.1} parent=11 // pred_check
        %p168 = pneg %p100
      $region22: #{temporal_block_forward.1} parent=11 // pred_check_branch
        %170 = sbr.rel (%p168) target = $region24
      $region23: #{temporal_block_forward.1} parent=11 // pred_region
        _
      $region24: #{temporal_block_forward.1} parent=11 // pred_fallthru
        _
      // Predicated region
      $region25: #{temporal_block_forward.1} parent=11 // pred_check
        %p171 = pneg %p121
      $region26: #{temporal_block_forward.1} parent=11 // pred_check_branch
        %173 = sbr.rel (%p171) target = $region28
      $region27: #{temporal_block_forward.1} parent=11 // pred_region
        _
      $region28: #{temporal_block_forward.1} parent=11 // pred_fallthru
        _
    $region12: #{temporal_block_forward.1} parent=5 // pred_fallthru
      _
    %p174 = scmp.lt.s32.totalorder %s11, 2
    // Predicated region
    $region29: #{temporal_block_forward.1} parent=5 // pred_check
      %p175 = pneg %p174
    $region30: #{temporal_block_forward.1} parent=5 // pred_check_branch
      %177 = sbr.rel (%p175) target = $region32
    $region31: #{temporal_block_forward.1} parent=5 // pred_region
      // Predicated region
      $region33: #{temporal_block_forward.1} parent=31 // pred_check
        %p178 = pneg %p31
      $region34: #{temporal_block_forward.1} parent=31 // pred_check_branch
        %180 = sbr.rel (%p178) target = $region36
      $region35: #{temporal_block_forward.1} parent=31 // pred_region
        %p181 = scmp.lt.s32.totalorder %s11, 1
        %s182 = scalar_select %p181, %s11, 1
        %s183 = smul.addr %s182, 3
        %s184 = smul.addr %s183, 8
        %s185 = scalar_lea.vmem %s0, %s184
      $region36: #{temporal_block_forward.1} parent=31 // pred_fallthru
        _
    $region32: #{temporal_block_forward.1} parent=5 // pred_fallthru
      _
    %p186 = scmp.le.s32.totalorder 1, %s11
    %p187 = scmp.lt.s32.totalorder %s11, 3
    %p188 = pnand %p186, %p187
    %p189 = pneg %p188
    // Predicated region
    $region37: #{temporal_block_forward.1} parent=5 // pred_check
      _
    $region38: #{temporal_block_forward.1} parent=5 // pred_check_branch
      %191 = sbr.rel (%p188) target = $region40
    $region39: #{temporal_block_forward.1} parent=5 // pred_region
      %s192 = ssub.s32 %s11, 1
      %p193 = scmp.lt.s32.totalorder %s16, 1
      %s194 = scalar_select %p193, %s16, 1
      %s195 = smul.addr %s194, 3
      %s196 = smul.addr %s195, 8
      %s197 = scalar_lea.vmem %s0, %s196
      %p198 = pneg %p37
      %p199 = pneg %p34
      %p200 = pneg %p58
      %p201 = pneg %p55
      %p202 = pneg %p79
      %p203 = pneg %p76
      %p204 = pneg %p100
      %p205 = pneg %p97
      %p206 = pneg %p121
      %p207 = pneg %p118
      %p208 = pneg %p147
      %p209 = pneg %p144
      %p210 = scmp.lt.s32.totalorder %s16, 1
      %s211 = scalar_select %p210, %s16, 1
      %s212 = smul.addr %s211, 2
      %s213 = smul.addr %s212, 8
      %s214 = scalar_lea.vmem %s5, %s213
      %p215 = scmp.lt.s32.totalorder %s16, 1
      %s216 = scalar_select %p215, %s16, 1
      %s217 = smul.addr %s216, 3
      %s218 = smul.addr %s217, 8
      %s219 = scalar_lea.vmem %s0, %s218
      %p220 = scmp.lt.s32.totalorder %s16, 1
      %s221 = scalar_select %p220, %s16, 1
      %s222 = smul.addr %s221, 2
      %s223 = smul.addr %s222, 8
      %s224 = scalar_lea.vmem %s5, %s223
      %v226 = vld [vmem:[%s219] sm:$0xff]
      %v227 = vld [vmem:[%s219 + $0x8] sm:$0xff]
      %v228 = vpack.c.bf16 %v227, %v226
      %v229 = vld [vmem:[%s1] sm:$0xf]
      %v230 = vld [vmem:[%s1 + $0x4] sm:$0xf]
      %v231 = vld [vmem:[%s1 + $0x8] sm:$0xf]
      %v232 = vld [vmem:[%s1 + $0xc] sm:$0xf]
      %v233 = vld [vmem:[%s1 + $0x10] sm:$0xf]
      %v234 = vld [vmem:[%s1 + $0x14] sm:$0xf]
      %v235 = vld [vmem:[%s1 + $0x18] sm:$0xf]
      %v236 = vld [vmem:[%s1 + $0x1c] sm:$0xf]
      %v237 = vld [vmem:[%s1 + $0x20] sm:$0xf]
      %v238 = vld [vmem:[%s1 + $0x24] sm:$0xf]
      %v239 = vld [vmem:[%s1 + $0x28] sm:$0xf]
      %v240 = vld [vmem:[%s1 + $0x2c] sm:$0xf]
      %v241 = vld [vmem:[%s1 + $0x30] sm:$0xf]
      %v242 = vld [vmem:[%s1 + $0x34] sm:$0xf]
      %v243 = vld [vmem:[%s1 + $0x38] sm:$0xf]
      %v244 = vld [vmem:[%s1 + $0x3c] sm:$0xf]
      %v245 = vld [vmem:[%s219 + $0x2] sm:$0xff]
      %v246 = vld [vmem:[%s219 + $0xa] sm:$0xff]
      %v247 = vpack.c.bf16 %v246, %v245
      %s248 = scalar_lea.vmem %s1, 64
      %v249 = vld [vmem:[%s248] sm:$0xf]
      %v250 = vld [vmem:[%s248 + $0x4] sm:$0xf]
      %v251 = vld [vmem:[%s248 + $0x8] sm:$0xf]
      %v252 = vld [vmem:[%s248 + $0xc] sm:$0xf]
      %v253 = vld [vmem:[%s248 + $0x10] sm:$0xf]
      %v254 = vld [vmem:[%s248 + $0x14] sm:$0xf]
      %v255 = vld [vmem:[%s248 + $0x18] sm:$0xf]
      %v256 = vld [vmem:[%s248 + $0x1c] sm:$0xf]
      %v257 = vld [vmem:[%s248 + $0x20] sm:$0xf]
      %v258 = vld [vmem:[%s248 + $0x24] sm:$0xf]
      %v259 = vld [vmem:[%s248 + $0x28] sm:$0xf]
      %v260 = vld [vmem:[%s248 + $0x2c] sm:$0xf]
      %v261 = vld [vmem:[%s248 + $0x30] sm:$0xf]
      %v262 = vld [vmem:[%s248 + $0x34] sm:$0xf]
      %v263 = vld [vmem:[%s248 + $0x38] sm:$0xf]
      %v264 = vld [vmem:[%s248 + $0x3c] sm:$0xf]
      %v281 = vunpack.c.l.b16 %v249
      %v282 = vunpack.c.l.b16 %v250
      %v283 = vunpack.c.l.b16 %v251
      %v284 = vunpack.c.l.b16 %v252
      %v285 = vunpack.c.l.b16 %v253
      %v286 = vunpack.c.l.b16 %v254
      %v287 = vunpack.c.l.b16 %v255
      %v288 = vunpack.c.l.b16 %v256
      %v289 = vunpack.c.l.b16 %v257
      %v290 = vunpack.c.l.b16 %v258
      %v291 = vunpack.c.l.b16 %v259
      %v292 = vunpack.c.l.b16 %v260
      %v293 = vunpack.c.l.b16 %v261
      %v294 = vunpack.c.l.b16 %v262
      %v295 = vunpack.c.l.b16 %v263
      %v296 = vunpack.c.l.b16 %v264
      %v297 = vpack.c.b16 %v282, %v281
      %v298 = vpack.c.b16 %v284, %v283
      %v299 = vpack.c.b16 %v286, %v285
      %v300 = vpack.c.b16 %v288, %v287
      %v301 = vpack.c.b16 %v290, %v289
      %v302 = vpack.c.b16 %v292, %v291
      %v303 = vpack.c.b16 %v294, %v293
      %v304 = vpack.c.b16 %v296, %v295
      %313 = vmatprep.subr.bf16.mxu0 0
      %314 = vmatpush1.bf16.msra.mxu0 %v297
      %315 = vmatprep.subr.bf16.mxu0 0
      %316 = vmatpush1.bf16.msra.mxu0 %v298
      %317 = vmatprep.subr.bf16.mxu0 0
      %318 = vmatpush1.bf16.msra.mxu0 %v299
      %319 = vmatprep.subr.bf16.mxu0 0
      %320 = vmatpush1.bf16.msra.mxu0 %v300
      %321 = vmatprep.subr.bf16.mxu0 0
      %322 = vmatpush1.bf16.msra.mxu0 %v301
      %323 = vmatprep.subr.bf16.mxu0 0
      %324 = vmatpush1.bf16.msra.mxu0 %v302
      %325 = vmatprep.subr.bf16.mxu0 0
      %326 = vmatpush1.bf16.msra.mxu0 %v303
      %327 = vmatprep.subr.bf16.mxu0 0
      %328 = vmatpush1.bf16.msra.mxu0 %v304
      %329 = vmatprep.subr.bf16.mxu0 0
      %330 = vmatpush1.bf16.msra.mxu0 0
      %331 = vmatprep.subr.bf16.mxu0 0
      %332 = vmatpush1.bf16.msra.mxu0 0
      %333 = vmatprep.subr.bf16.mxu0 0
      %334 = vmatpush1.bf16.msra.mxu0 0
      %335 = vmatprep.subr.bf16.mxu0 0
      %336 = vmatpush1.bf16.msra.mxu0 0
      %337 = vmatprep.subr.bf16.mxu0 0
      %338 = vmatpush1.bf16.msra.mxu0 0
      %339 = vmatprep.subr.bf16.mxu0 0
      %340 = vmatpush1.bf16.msra.mxu0 0
      %341 = vmatprep.subr.bf16.mxu0 0
      %342 = vmatpush1.bf16.msra.mxu0 0
      %343 = vmatprep.subr.bf16.mxu0 0
      %344 = vmatpush1.bf16.msra.mxu0 0
      %345 = vmatprep.mubr.bf16.mxu0 0
      %346 = vmatmul.mubr.bf16.gmra.mrb[0].mxu0 %v247
      %v347 = vpop.f32.mrb[0].mxu0
      %v348 = vadd.f32 0.0, %v347
      %v349 = vpop.f32.mrb[0].mxu0
      %v350 = vpop.f32.mrb[0].mxu0
      %v351 = vadd.f32 0.0, %v350
      %v352 = vpop.f32.mrb[0].mxu0
      %353 = vdwg.mxu0
      %v370 = vunpack.c.l.b16 %v229
      %v371 = vunpack.c.l.b16 %v230
      %v372 = vunpack.c.l.b16 %v231
      %v373 = vunpack.c.l.b16 %v232
      %v374 = vunpack.c.l.b16 %v233
      %v375 = vunpack.c.l.b16 %v234
      %v376 = vunpack.c.l.b16 %v235
      %v377 = vunpack.c.l.b16 %v236
      %v378 = vunpack.c.l.b16 %v237
      %v379 = vunpack.c.l.b16 %v238
      %v380 = vunpack.c.l.b16 %v239
      %v381 = vunpack.c.l.b16 %v240
      %v382 = vunpack.c.l.b16 %v241
      %v383 = vunpack.c.l.b16 %v242
      %v384 = vunpack.c.l.b16 %v243
      %v385 = vunpack.c.l.b16 %v244
      %v386 = vpack.c.b16 %v371, %v370
      %v387 = vpack.c.b16 %v373, %v372
      %v388 = vpack.c.b16 %v375, %v374
      %v389 = vpack.c.b16 %v377, %v376
      %v390 = vpack.c.b16 %v379, %v378
      %v391 = vpack.c.b16 %v381, %v380
      %v392 = vpack.c.b16 %v383, %v382
      %v393 = vpack.c.b16 %v385, %v384
      %402 = vmatprep.subr.bf16.mxu0 0
      %403 = vmatpush1.bf16.msra.mxu0 %v386
      %404 = vmatprep.subr.bf16.mxu0 0
      %405 = vmatpush1.bf16.msra.mxu0 %v387
      %406 = vmatprep.subr.bf16.mxu0 0
      %407 = vmatpush1.bf16.msra.mxu0 %v388
      %408 = vmatprep.subr.bf16.mxu0 0
      %409 = vmatpush1.bf16.msra.mxu0 %v389
      %410 = vmatprep.subr.bf16.mxu0 0
      %411 = vmatpush1.bf16.msra.mxu0 %v390
      %412 = vmatprep.subr.bf16.mxu0 0
      %413 = vmatpush1.bf16.msra.mxu0 %v391
      %414 = vmatprep.subr.bf16.mxu0 0
      %415 = vmatpush1.bf16.msra.mxu0 %v392
      %416 = vmatprep.subr.bf16.mxu0 0
      %417 = vmatpush1.bf16.msra.mxu0 %v393
      %418 = vmatprep.subr.bf16.mxu0 0
      %419 = vmatpush1.bf16.msra.mxu0 0
      %420 = vmatprep.subr.bf16.mxu0 0
      %421 = vmatpush1.bf16.msra.mxu0 0
      %422 = vmatprep.subr.bf16.mxu0 0
      %423 = vmatpush1.bf16.msra.mxu0 0
      %424 = vmatprep.subr.bf16.mxu0 0
      %425 = vmatpush1.bf16.msra.mxu0 0
      %426 = vmatprep.subr.bf16.mxu0 0
      %427 = vmatpush1.bf16.msra.mxu0 0
      %428 = vmatprep.subr.bf16.mxu0 0
      %429 = vmatpush1.bf16.msra.mxu0 0
      %430 = vmatprep.subr.bf16.mxu0 0
      %431 = vmatpush1.bf16.msra.mxu0 0
      %432 = vmatprep.subr.bf16.mxu0 0
      %433 = vmatpush1.bf16.msra.mxu0 0
      %434 = vmatprep.mubr.bf16.mxu0 0
      %435 = vmatmul.mubr.bf16.gmra.mrb[0].mxu0 %v228
      %v436 = vpop.f32.mrb[0].mxu0
      %v437 = vadd.f32 %v348, %v436
      %v438 = vpop.f32.mrb[0].mxu0
      %v439 = vpop.f32.mrb[0].mxu0
      %v440 = vadd.f32 %v351, %v439
      %v441 = vpop.f32.mrb[0].mxu0
      %442 = vdwg.mxu0
      %v443 = vld [vmem:[%s2] sm:$0x1]
      %v445 = vlaneseq
      %v446 = vshrl.u32 %v445, 7
      %v447 = vsub.s32 0, %v446
      %v448 = vrot.slane %v443, %v447
      %v450 = vadd.f32 %v437, %v448
      %v451 = vadd.f32 %v440, %v448
      %v452 = vmax.f32 %v450, 0.0
      %v453 = vmax.f32 %v451, 0.0
      %454 = vst [vmem:[#allocation2] sm:$0x3] 0.0
      %455 = vst [vmem:[#allocation2 + $0x2] sm:$0xff] %v452
      %456 = vst [vmem:[#allocation2 + $0xa] sm:$0xff] %v453
      %v457 = vld [vmem:[#allocation2] sm:$0xff]
      %v458 = vld [vmem:[#allocation2 + $0x8] sm:$0xff]
      %v459 = vpack.c.bf16 %v458, %v457
      %v460 = vld [vmem:[%s3] sm:$0xf]
      %v461 = vld [vmem:[%s3 + $0x4] sm:$0xf]
      %v462 = vld [vmem:[%s3 + $0x8] sm:$0xf]
      %v463 = vld [vmem:[%s3 + $0xc] sm:$0xf]
      %v464 = vld [vmem:[%s3 + $0x10] sm:$0xf]
      %v465 = vld [vmem:[%s3 + $0x14] sm:$0xf]
      %v466 = vld [vmem:[%s3 + $0x18] sm:$0xf]
      %v467 = vld [vmem:[%s3 + $0x1c] sm:$0xf]
      %v468 = vld [vmem:[%s3 + $0x20] sm:$0xf]
      %v469 = vld [vmem:[%s3 + $0x24] sm:$0xf]
      %v470 = vld [vmem:[%s3 + $0x28] sm:$0xf]
      %v471 = vld [vmem:[%s3 + $0x2c] sm:$0xf]
      %v472 = vld [vmem:[%s3 + $0x30] sm:$0xf]
      %v473 = vld [vmem:[%s3 + $0x34] sm:$0xf]
      %v474 = vld [vmem:[%s3 + $0x38] sm:$0xf]
      %v475 = vld [vmem:[%s3 + $0x3c] sm:$0xf]
      %v476 = vld [vmem:[#allocation2 + $0x2] sm:$0xff]
      %v477 = vld [vmem:[#allocation2 + $0xa] sm:$0xff]
      %v478 = vpack.c.bf16 %v477, %v476
      %s479 = scalar_lea.vmem %s3, 64
      %v480 = vld [vmem:[%s479] sm:$0xf]
      %v481 = vld [vmem:[%s479 + $0x4] sm:$0xf]
      %v482 = vld [vmem:[%s479 + $0x8] sm:$0xf]
      %v483 = vld [vmem:[%s479 + $0xc] sm:$0xf]
      %v484 = vld [vmem:[%s479 + $0x10] sm:$0xf]
      %v485 = vld [vmem:[%s479 + $0x14] sm:$0xf]
      %v486 = vld [vmem:[%s479 + $0x18] sm:$0xf]
      %v487 = vld [vmem:[%s479 + $0x1c] sm:$0xf]
      %v488 = vld [vmem:[%s479 + $0x20] sm:$0xf]
      %v489 = vld [vmem:[%s479 + $0x24] sm:$0xf]
      %v490 = vld [vmem:[%s479 + $0x28] sm:$0xf]
      %v491 = vld [vmem:[%s479 + $0x2c] sm:$0xf]
      %v492 = vld [vmem:[%s479 + $0x30] sm:$0xf]
      %v493 = vld [vmem:[%s479 + $0x34] sm:$0xf]
      %v494 = vld [vmem:[%s479 + $0x38] sm:$0xf]
      %v495 = vld [vmem:[%s479 + $0x3c] sm:$0xf]
      %v512 = vunpack.c.l.b16 %v480
      %v513 = vunpack.c.l.b16 %v481
      %v514 = vunpack.c.l.b16 %v482
      %v515 = vunpack.c.l.b16 %v483
      %v516 = vunpack.c.l.b16 %v484
      %v517 = vunpack.c.l.b16 %v485
      %v518 = vunpack.c.l.b16 %v486
      %v519 = vunpack.c.l.b16 %v487
      %v520 = vunpack.c.l.b16 %v488
      %v521 = vunpack.c.l.b16 %v489
      %v522 = vunpack.c.l.b16 %v490
      %v523 = vunpack.c.l.b16 %v491
      %v524 = vunpack.c.l.b16 %v492
      %v525 = vunpack.c.l.b16 %v493
      %v526 = vunpack.c.l.b16 %v494
      %v527 = vunpack.c.l.b16 %v495
      %v528 = vpack.c.b16 %v513, %v512
      %v529 = vpack.c.b16 %v515, %v514
      %v530 = vpack.c.b16 %v517, %v516
      %v531 = vpack.c.b16 %v519, %v518
      %v532 = vpack.c.b16 %v521, %v520
      %v533 = vpack.c.b16 %v523, %v522
      %v534 = vpack.c.b16 %v525, %v524
      %v535 = vpack.c.b16 %v527, %v526
      %544 = vmatprep.subr.bf16.mxu0 0
      %545 = vmatpush1.bf16.msra.mxu0 %v528
      %546 = vmatprep.subr.bf16.mxu0 0
      %547 = vmatpush1.bf16.msra.mxu0 %v529
      %548 = vmatprep.subr.bf16.mxu0 0
      %549 = vmatpush1.bf16.msra.mxu0 %v530
      %550 = vmatprep.subr.bf16.mxu0 0
      %551 = vmatpush1.bf16.msra.mxu0 %v531
      %552 = vmatprep.subr.bf16.mxu0 0
      %553 = vmatpush1.bf16.msra.mxu0 %v532
      %554 = vmatprep.subr.bf16.mxu0 0
      %555 = vmatpush1.bf16.msra.mxu0 %v533
      %556 = vmatprep.subr.bf16.mxu0 0
      %557 = vmatpush1.bf16.msra.mxu0 %v534
      %558 = vmatprep.subr.bf16.mxu0 0
      %559 = vmatpush1.bf16.msra.mxu0 %v535
      %560 = vmatprep.subr.bf16.mxu0 0
      %561 = vmatpush1.bf16.msra.mxu0 0
      %562 = vmatprep.subr.bf16.mxu0 0
      %563 = vmatpush1.bf16.msra.mxu0 0
      %564 = vmatprep.subr.bf16.mxu0 0
      %565 = vmatpush1.bf16.msra.mxu0 0
      %566 = vmatprep.subr.bf16.mxu0 0
      %567 = vmatpush1.bf16.msra.mxu0 0
      %568 = vmatprep.subr.bf16.mxu0 0
      %569 = vmatpush1.bf16.msra.mxu0 0
      %570 = vmatprep.subr.bf16.mxu0 0
      %571 = vmatpush1.bf16.msra.mxu0 0
      %572 = vmatprep.subr.bf16.mxu0 0
      %573 = vmatpush1.bf16.msra.mxu0 0
      %574 = vmatprep.subr.bf16.mxu0 0
      %575 = vmatpush1.bf16.msra.mxu0 0
      %576 = vmatprep.mubr.bf16.mxu0 0
      %577 = vmatmul.mubr.bf16.gmra.mrb[0].mxu0 %v478
      %v578 = vpop.f32.mrb[0].mxu0
      %v579 = vadd.f32 0.0, %v578
      %v580 = vpop.f32.mrb[0].mxu0
      %v581 = vpop.f32.mrb[0].mxu0
      %v582 = vadd.f32 0.0, %v581
      %v583 = vpop.f32.mrb[0].mxu0
      %584 = vdwg.mxu0
      %v601 = vunpack.c.l.b16 %v460
      %v602 = vunpack.c.l.b16 %v461
      %v603 = vunpack.c.l.b16 %v462
      %v604 = vunpack.c.l.b16 %v463
      %v605 = vunpack.c.l.b16 %v464
      %v606 = vunpack.c.l.b16 %v465
      %v607 = vunpack.c.l.b16 %v466
      %v608 = vunpack.c.l.b16 %v467
      %v609 = vunpack.c.l.b16 %v468
      %v610 = vunpack.c.l.b16 %v469
      %v611 = vunpack.c.l.b16 %v470
      %v612 = vunpack.c.l.b16 %v471
      %v613 = vunpack.c.l.b16 %v472
      %v614 = vunpack.c.l.b16 %v473
      %v615 = vunpack.c.l.b16 %v474
      %v616 = vunpack.c.l.b16 %v475
      %v617 = vpack.c.b16 %v602, %v601
      %v618 = vpack.c.b16 %v604, %v603
      %v619 = vpack.c.b16 %v606, %v605
      %v620 = vpack.c.b16 %v608, %v607
      %v621 = vpack.c.b16 %v610, %v609
      %v622 = vpack.c.b16 %v612, %v611
      %v623 = vpack.c.b16 %v614, %v613
      %v624 = vpack.c.b16 %v616, %v615
      %633 = vmatprep.subr.bf16.mxu0 0
      %634 = vmatpush1.bf16.msra.mxu0 %v617
      %635 = vmatprep.subr.bf16.mxu0 0
      %636 = vmatpush1.bf16.msra.mxu0 %v618
      %637 = vmatprep.subr.bf16.mxu0 0
      %638 = vmatpush1.bf16.msra.mxu0 %v619
      %639 = vmatprep.subr.bf16.mxu0 0
      %640 = vmatpush1.bf16.msra.mxu0 %v620
      %641 = vmatprep.subr.bf16.mxu0 0
      %642 = vmatpush1.bf16.msra.mxu0 %v621
      %643 = vmatprep.subr.bf16.mxu0 0
      %644 = vmatpush1.bf16.msra.mxu0 %v622
      %645 = vmatprep.subr.bf16.mxu0 0
      %646 = vmatpush1.bf16.msra.mxu0 %v623
      %647 = vmatprep.subr.bf16.mxu0 0
      %648 = vmatpush1.bf16.msra.mxu0 %v624
      %649 = vmatprep.subr.bf16.mxu0 0
      %650 = vmatpush1.bf16.msra.mxu0 0
      %651 = vmatprep.subr.bf16.mxu0 0
      %652 = vmatpush1.bf16.msra.mxu0 0
      %653 = vmatprep.subr.bf16.mxu0 0
      %654 = vmatpush1.bf16.msra.mxu0 0
      %655 = vmatprep.subr.bf16.mxu0 0
      %656 = vmatpush1.bf16.msra.mxu0 0
      %657 = vmatprep.subr.bf16.mxu0 0
      %658 = vmatpush1.bf16.msra.mxu0 0
      %659 = vmatprep.subr.bf16.mxu0 0
      %660 = vmatpush1.bf16.msra.mxu0 0
      %661 = vmatprep.subr.bf16.mxu0 0
      %662 = vmatpush1.bf16.msra.mxu0 0
      %663 = vmatprep.subr.bf16.mxu0 0
      %664 = vmatpush1.bf16.msra.mxu0 0
      %665 = vmatprep.mubr.bf16.mxu0 0
      %666 = vmatmul.mubr.bf16.gmra.mrb[0].mxu0 %v459
      %v667 = vpop.f32.mrb[0].mxu0
      %v668 = vadd.f32 %v579, %v667
      %v669 = vpop.f32.mrb[0].mxu0
      %v670 = vpop.f32.mrb[0].mxu0
      %v671 = vadd.f32 %v582, %v670
      %v672 = vpop.f32.mrb[0].mxu0
      %673 = vdwg.mxu0
      %v674 = vld [vmem:[%s4] sm:$0x1]
      %v676 = vlaneseq
      %v677 = vshrl.u32 %v676, 7
      %v678 = vsub.s32 0, %v677
      %v679 = vrot.slane %v674, %v678
      %v681 = vadd.f32 %v668, %v679
      %v682 = vadd.f32 %v671, %v679
      %v683 = vmax.f32 %v681, 0.0
      %v684 = vmax.f32 %v682, 0.0
      %v685 = vld [vmem:[%s219 + $0x2] sm:$0xff]
      %v686 = vld [vmem:[%s219 + $0xa] sm:$0xff]
      %v687 = vadd.f32 %v683, %v685
      %v688 = vadd.f32 %v684, %v686
      %v689 = vmax.f32 %v687, 0.0
      %v690 = vmax.f32 %v688, 0.0
      %691 = vst [vmem:[%s224] sm:$0xff] %v689
      %692 = vst [vmem:[%s224 + $0x8] sm:$0xff] %v690
      %p693 = scmp.lt.s32.totalorder %s16, 1
      %s694 = scalar_select %p693, %s16, 1
      %s695 = smul.addr %s694, 2
      %s696 = smul.addr %s695, 8
      %s697 = scalar_lea.vmem %s5, %s696
      // Predicated region
      $region41: #{temporal_block_forward.1} parent=39 // pred_check
        %p698 = pneg %p144
      $region42: #{temporal_block_forward.1} parent=39 // pred_check_branch
        %700 = sbr.rel (%p698) target = $region44
      $region43: #{temporal_block_forward.1} parent=39 // pred_region
        _
      $region44: #{temporal_block_forward.1} parent=39 // pred_fallthru
        _
    $region40: #{temporal_block_forward.1} parent=5 // pred_fallthru
      _
    %p701 = scmp.le.s32.totalorder 2, %s11
    // Predicated region
    $region45: #{temporal_block_forward.1} parent=5 // pred_check
      %p702 = pneg %p701
    $region46: #{temporal_block_forward.1} parent=5 // pred_check_branch
      %704 = sbr.rel (%p702) target = $region48
    $region47: #{temporal_block_forward.1} parent=5 // pred_region
      %s705 = ssub.s32 %s11, 2
      // Predicated region
      $region49: #{temporal_block_forward.1} parent=47 // pred_check
        %p706 = pneg %p150
      $region50: #{temporal_block_forward.1} parent=47 // pred_check_branch
        %708 = sbr.rel (%p706) target = $region52
      $region51: #{temporal_block_forward.1} parent=47 // pred_region
        %p709 = scmp.lt.s32.totalorder %s17, 1
        %s710 = scalar_select %p709, %s17, 1
        %s711 = smul.addr %s710, 2
        %s712 = smul.addr %s711, 8
        %s713 = scalar_lea.vmem %s5, %s712
      $region52: #{temporal_block_forward.1} parent=47 // pred_fallthru
        _
    $region48: #{temporal_block_forward.1} parent=5 // pred_fallthru
      _
  $region6: #{temporal_block_forward.1} parent=0 // loop_footer
    %s15 = sadd.s32 1, %s11
  $region7: #{temporal_block_forward.1} parent=0 // loop_footer_branch
    %10 = sbr.rel target = $region3
  $region8: #{temporal_block_forward.1} parent=0 // loop_exit
    _

</llo_original>
